<compile_context>
chip_gen: v7x
topology: tpu7x:2x2x1
jax: 0.10.0
libtpu: 0.0.40
codegen_flags: <defaults>
</compile_context>

<pallas_src>
import functools

import jax
import jax.numpy as jnp
from jax.experimental import pallas as pl
from jax.experimental.pallas import tpu as pltpu

FILTER_SIZES = (2, 3, 4)
KMAX = max(FILTER_SIZES)


def _round_up(x, m):
    return ((x + m - 1) // m) * m


# ----------------------------------------------------------------------------
# Kernel
# ----------------------------------------------------------------------------
def textcnn_kernel(win_ref, period_ref, price_ref,
                   cw_ref, cb_ref, fcw_ref, fcb_ref,
                   fc1w_ref, fc1b_ref, fc2wh_ref, fc2wp_ref, fc2b_ref,
                   out_ref, *, num_filters):
    TB, L, KE = win_ref.shape
    Fp = cw_ref.shape[1]
    F = num_filters

    # --- conv stage: one im2col matmul covering all three filter banks -------
    win = win_ref[...].reshape(TB * L, KE)                       # bf16
    conv = jnp.dot(win, cw_ref[...],
                   preferred_element_type=jnp.float32)           # (TB*L, Fp) f32
    conv = jnp.maximum(conv + cb_ref[...], 0.0)                  # bias + ReLU
    conv = conv.reshape(TB, L, Fp)

    # Mask window positions that run past the (unpadded) sequence end for each
    # filter width.  ReLU output >= 0 and every filter has >= 1 valid position,
    # so zero-masking keeps the max identical to a max over valid positions.
    t_idx = jax.lax.broadcasted_iota(jnp.int32, (L, Fp), 0)
    f_idx = jax.lax.broadcasted_iota(jnp.int32, (L, Fp), 1)
    klen = jnp.full((L, Fp), FILTER_SIZES[0], jnp.int32)
    for g in range(1, len(FILTER_SIZES)):
        klen = jnp.where(f_idx >= g * F, FILTER_SIZES[g], klen)
    valid = t_idx <= (L - klen)
    conv = jnp.where(valid[None, :, :], conv, 0.0)
    feat = jnp.max(conv, axis=1)                                 # (TB, Fp) f32

    # --- FC head --------------------------------------------------------------
    h = jnp.tanh(jnp.dot(feat.astype(jnp.bfloat16), fcw_ref[...],
                         preferred_element_type=jnp.float32) + fcb_ref[...])
    # torch: transpose / div(exp(value*period/30)) / transpose == per-row scale.
    # value == 1.0; divide replaced by multiply with exp(-period/30) (EUP + VPU).
    h = h * jnp.exp(period_ref[...] * jnp.float32(-1.0 / 30.0))
    h = jnp.tanh(jnp.dot(h.astype(jnp.bfloat16), fc1w_ref[...],
                         preferred_element_type=jnp.float32) + fc1b_ref[...])
    # fc2 over concat([h, price])  ==  h @ W_h + price @ W_p   (no lane concat)
    out = jnp.dot(h.astype(jnp.bfloat16), fc2wh_ref[...],
                  preferred_element_type=jnp.float32)
    out = out + jnp.dot(price_ref[...], fc2wp_ref[...],
                        preferred_element_type=jnp.float32)
    out_ref[...] = out + fc2b_ref[...]


# ----------------------------------------------------------------------------
# Parameter preparation (layout plumbing, plain JAX)
# ----------------------------------------------------------------------------
def prepare_kernel_params(params, embed_dim, num_filters, hidden_size):
    """Build fused / padded / bf16 kernel-layout weights from model params."""
    E, F, H = embed_dim, num_filters, hidden_size
    nF = len(FILTER_SIZES)
    Fp = _round_up(nF * F, 128)           # lane-dense combined filter width
    KE = KMAX * E

    cw = jnp.zeros((KE, Fp), jnp.float32)
    cb = jnp.zeros((1, Fp), jnp.float32)
    for g, k in enumerate(FILTER_SIZES):
        w = params[f'conv{k}_w']          # (k, E, F)
        b = params[f'conv{k}_b']          # (1, F)
        cw = cw.at[:k * E, g * F:(g + 1) * F].set(w.reshape(k * E, F))
        cb = cb.at[:, g * F:(g + 1) * F].set(b)

    fcw = jnp.zeros((Fp, H), jnp.float32).at[:nF * F, :].set(params['fc_w'])

    return dict(
        cw=cw.astype(jnp.bfloat16),
        cb=cb,
        fcw=fcw.astype(jnp.bfloat16),
        fcb=params['fc_b'],
        fc1w=params['fc1_w'].astype(jnp.bfloat16),
        fc1b=params['fc1_b'],
        fc2wh=params['fc2_w'][:H].astype(jnp.bfloat16),
        fc2wp=params['fc2_w'][H:].astype(jnp.bfloat16),
        fc2b=params['fc2_b'],
    )


# ----------------------------------------------------------------------------
# Forward wrapper
# ----------------------------------------------------------------------------
def textcnn_forward(params, kparams, x_ids, period, price):
    B, L = x_ids.shape
    E = params['emb'].shape[1]
    F = params[f'conv{FILTER_SIZES[0]}_b'].shape[-1]
    C = kparams['fc2b'].shape[-1]
    KE = KMAX * E

    # Embedding gather + im2col slab in plain JAX (data movement / layout
    # plumbing only); the kernel gets a lane-dense (B, L, KMAX*E) slab.
    # TODO(synk): for very large B*L, fold the gather into the kernel with a
    # scalar-prefetched id table + manual DMA double-buffering instead.
    emb = params['emb'][x_ids]                                    # (B, L, E) f32
    emb_p = jnp.pad(emb, ((0, 0), (0, KMAX - 1), (0, 0)))
    win = jnp.concatenate([emb_p[:, j:j + L, :] for j in range(KMAX)],
                          axis=-1).astype(jnp.bfloat16)           # (B, L, KE)

    period2 = period.reshape(B, 1).astype(jnp.float32)
    price_b = price.astype(jnp.bfloat16)

    # Batch tiling: one big tile if it fits, otherwise 128-row tiles on a
    # "parallel" grid axis (sharded across TensorCores on v7x).
    TB = B if B <= 128 else 128
    Bp = _round_up(B, TB)
    if Bp != B:
        pad = Bp - B
        win = jnp.pad(win, ((0, pad), (0, 0), (0, 0)))
        period2 = jnp.pad(period2, ((0, pad), (0, 0)))
        price_b = jnp.pad(price_b, ((0, pad), (0, 0)))

    weight_args = (kparams['cw'], kparams['cb'], kparams['fcw'], kparams['fcb'],
                   kparams['fc1w'], kparams['fc1b'], kparams['fc2wh'],
                   kparams['fc2wp'], kparams['fc2b'])
    weight_specs = [pl.BlockSpec(w.shape, lambda i, n=w.ndim: (0,) * n)
                    for w in weight_args]

    out = pl.pallas_call(
        functools.partial(textcnn_kernel, num_filters=F),
        out_shape=jax.ShapeDtypeStruct((Bp, C), jnp.float32),
        grid=(Bp // TB,),
        in_specs=[
            pl.BlockSpec((TB, L, KE), lambda i: (i, 0, 0)),       # window slab
            pl.BlockSpec((TB, 1), lambda i: (i, 0)),              # period
            pl.BlockSpec((TB, price_b.shape[1]), lambda i: (i, 0)),  # price
            *weight_specs,
        ],
        out_specs=pl.BlockSpec((TB, C), lambda i: (i, 0)),
        compiler_params=pltpu.CompilerParams(
            dimension_semantics=("parallel",),
            vmem_limit_bytes=32 * 1024 * 1024,
        ),
    )(win, period2, price_b, *weight_args)
    return out[:B]


# ----------------------------------------------------------------------------
# Model params (PyTorch-equivalent layout) and pure-JAX reference
# ----------------------------------------------------------------------------
def init_params(key, n_vocab, embed_dim, hidden_size, num_filters, num_classes):
    keys = jax.random.split(key, 16)
    s = 0.1
    p = {}
    p['emb'] = jax.random.normal(keys[0], (n_vocab, embed_dim), jnp.float32) * s
    for i, k in enumerate(FILTER_SIZES):
        # PyTorch Conv2d weight layout (F, 1, k, E) -> kernel layout (k, E, F)
        w = jax.random.normal(keys[1 + i], (num_filters, 1, k, embed_dim),
                              jnp.float32) * s
        p[f'conv{k}_w'] = jnp.transpose(w[:, 0], (1, 2, 0))
        p[f'conv{k}_b'] = (jax.random.normal(keys[4 + i], (num_filters,),
                                             jnp.float32) * s).reshape(1, num_filters)
    fc_in = num_filters * len(FILTER_SIZES)
    # Linear weights stored as (in, out) == PyTorch (out, in) transposed.
    p['fc_w'] = (jax.random.normal(keys[7], (hidden_size, fc_in), jnp.float32) * s).T
    p['fc_b'] = (jax.random.normal(keys[8], (hidden_size,), jnp.float32) * s
                 ).reshape(1, hidden_size)
    p['fc1_w'] = (jax.random.normal(keys[9], (hidden_size, hidden_size),
                                    jnp.float32) * s).T
    p['fc1_b'] = (jax.random.normal(keys[10], (hidden_size,), jnp.float32) * s
                  ).reshape(1, hidden_size)
    p['fc2_w'] = (jax.random.normal(keys[11], (num_classes, hidden_size + 4),
                                    jnp.float32) * s).T
    p['fc2_b'] = (jax.random.normal(keys[12], (num_classes,), jnp.float32) * s
                  ).reshape(1, num_classes)
    return p


def _bf16_dot(a, b):
    # bf16 x bf16 -> f32 accumulation, matching the kernel's matmul precision.
    return jax.lax.dot_general(
        a.astype(jnp.bfloat16), b.astype(jnp.bfloat16),
        dimension_numbers=(((a.ndim - 1,), (0,)), ((), ())),
        preferred_element_type=jnp.float32)


def reference_forward(params, x_ids, period, price):
    emb = params['emb'][x_ids]                          # (B, L, E)
    B, L, E = emb.shape
    pooled = []
    for k in FILTER_SIZES:
        w, b = params[f'conv{k}_w'], params[f'conv{k}_b']
        T = L - k + 1
        acc = sum(_bf16_dot(emb[:, j:j + T, :], w[j]) for j in range(k))
        conv = jax.nn.relu(acc + b)
        pooled.append(conv.max(axis=1))
    feat = jnp.concatenate(pooled, axis=1)
    h = jnp.tanh(_bf16_dot(feat, params['fc_w']) + params['fc_b'])
    h = h / jnp.exp(period[:, None] / 30.0)
    h = jnp.tanh(_bf16_dot(h, params['fc1_w']) + params['fc1_b'])
    h = jnp.concatenate([h, price], axis=1)
    return _bf16_dot(h, params['fc2_w']) + params['fc2_b']


if __name__ == "__main__":
    B, L = 2, 16
    n_vocab, embed_dim = 50, 32
    hidden_size, num_filters, num_classes = 32, 8, 5

    key = jax.random.PRNGKey(0)
    k_ids, k_per, k_pr, k_param = jax.random.split(key, 4)

    x_ids = jax.random.randint(k_ids, (B, L), 0, n_vocab, dtype=jnp.int32)
    period = jax.random.uniform(k_per, (B,), jnp.float32, 1.0, 30.0)
    price = jax.random.normal(k_pr, (B, 4), jnp.float32)

    params = init_params(k_param, n_vocab, embed_dim, hidden_size,
                         num_filters, num_classes)
    kparams = prepare_kernel_params(params, embed_dim, num_filters, hidden_size)

    out = jax.block_until_ready(
        textcnn_forward(params, kparams, x_ids, period, price))
    ref = jax.block_until_ready(reference_forward(params, x_ids, period, price))

    assert out.shape == (B, num_classes), out.shape
    assert jnp.allclose(out, ref, rtol=2e-2, atol=1e-3), (out, ref)
    print("KERNEL_OK")
</pallas_src>

<mosaic_0001>
module attributes {stable_mosaic.version = 11 : i64} {
  func.func @textcnn_kernel(%arg0: i32, %arg1: memref<2x16x128xbf16, #tpu.memory_space<vmem>>, %arg2: memref<2x1xf32, #tpu.memory_space<vmem>>, %arg3: memref<2x4xbf16, #tpu.memory_space<vmem>>, %arg4: memref<128x128xbf16, #tpu.memory_space<vmem>>, %arg5: memref<1x128xf32, #tpu.memory_space<vmem>>, %arg6: memref<128x32xbf16, #tpu.memory_space<vmem>>, %arg7: memref<1x32xf32, #tpu.memory_space<vmem>>, %arg8: memref<32x32xbf16, #tpu.memory_space<vmem>>, %arg9: memref<1x32xf32, #tpu.memory_space<vmem>>, %arg10: memref<32x5xbf16, #tpu.memory_space<vmem>>, %arg11: memref<4x5xbf16, #tpu.memory_space<vmem>>, %arg12: memref<1x5xf32, #tpu.memory_space<vmem>>, %arg13: memref<2x5xf32, #tpu.memory_space<vmem>>) attributes {dimension_semantics = [#tpu.dimension_semantics<parallel>], iteration_bounds = array<i64: 1>, scalar_prefetch = 0 : i64, scratch_operands = 0 : i64, tpu.core_type = #tpu.core_type<tc>, window_params = [{transform_indices = @transform_0, window_bounds = array<i64: 2, 16, 128>}, {transform_indices = @transform_1, window_bounds = array<i64: 2, 1>}, {transform_indices = @transform_2, window_bounds = array<i64: 2, 4>}, {pipeline_mode = #tpu.pipeline_mode<synchronous>, transform_indices = @transform_3, window_bounds = array<i64: 128, 128>}, {pipeline_mode = #tpu.pipeline_mode<synchronous>, transform_indices = @transform_4, window_bounds = array<i64: 1, 128>}, {pipeline_mode = #tpu.pipeline_mode<synchronous>, transform_indices = @transform_5, window_bounds = array<i64: 128, 32>}, {pipeline_mode = #tpu.pipeline_mode<synchronous>, transform_indices = @transform_6, window_bounds = array<i64: 1, 32>}, {pipeline_mode = #tpu.pipeline_mode<synchronous>, transform_indices = @transform_7, window_bounds = array<i64: 32, 32>}, {pipeline_mode = #tpu.pipeline_mode<synchronous>, transform_indices = @transform_8, window_bounds = array<i64: 1, 32>}, {pipeline_mode = #tpu.pipeline_mode<synchronous>, transform_indices = @transform_9, window_bounds = array<i64: 32, 5>}, {pipeline_mode = #tpu.pipeline_mode<synchronous>, transform_indices = @transform_10, window_bounds = array<i64: 4, 5>}, {pipeline_mode = #tpu.pipeline_mode<synchronous>, transform_indices = @transform_11, window_bounds = array<i64: 1, 5>}, {transform_indices = @transform_12, window_bounds = array<i64: 2, 5>}]} {
    %c0 = arith.constant 0 : index
    %c0_0 = arith.constant 0 : index
    %c0_1 = arith.constant 0 : index
    %0 = vector.load %arg1[%c0, %c0_0, %c0_1] : memref<2x16x128xbf16, #tpu.memory_space<vmem>>, vector<2x16x128xbf16>
    %1 = vector.shape_cast %0 : vector<2x16x128xbf16> to vector<32x128xbf16>
    %c0_2 = arith.constant 0 : index
    %c0_3 = arith.constant 0 : index
    %2 = vector.load %arg4[%c0_2, %c0_3] : memref<128x128xbf16, #tpu.memory_space<vmem>>, vector<128x128xbf16>
    %cst = arith.constant dense<0.000000e+00> : vector<32x128xf32>
    %3 = tpu.matmul %1, %2, %cst {dimension_numbers = #tpu.dot_dimension_numbers<[1], [0], [0], [1], [0, 0, 1, 1], [], []>} : vector<32x128xbf16>, vector<128x128xbf16>, vector<32x128xf32> -> vector<32x128xf32>
    %c0_4 = arith.constant 0 : index
    %c0_5 = arith.constant 0 : index
    %4 = vector.load %arg5[%c0_4, %c0_5] : memref<1x128xf32, #tpu.memory_space<vmem>>, vector<1x128xf32>
    %5 = vector.broadcast %4 : vector<1x128xf32> to vector<32x128xf32>
    %6 = arith.addf %3, %5 : vector<32x128xf32>
    %cst_6 = arith.constant 0.000000e+00 : f32
    %7 = vector.broadcast %cst_6 : f32 to vector<32x128xf32>
    %8 = arith.maximumf %6, %7 : vector<32x128xf32>
    %9 = vector.shape_cast %8 : vector<32x128xf32> to vector<2x16x128xf32>
    %10 = tpu.iota {dimensions = array<i32: 0>} : vector<16x128xi32>
    %11 = tpu.iota {dimensions = array<i32: 1>} : vector<16x128xi32>
    %c2_i32 = arith.constant 2 : i32
    %12 = vector.broadcast %c2_i32 : i32 to vector<16x128xi32>
    %c8_i32 = arith.constant 8 : i32
    %13 = vector.broadcast %c8_i32 : i32 to vector<16x128xi32>
    %14 = arith.cmpi sge, %11, %13 : vector<16x128xi32>
    %c3_i32 = arith.constant 3 : i32
    %15 = vector.broadcast %c3_i32 : i32 to vector<16x128xi32>
    %16 = arith.select %14, %15, %12 : vector<16x128xi1>, vector<16x128xi32>
    %c16_i32 = arith.constant 16 : i32
    %17 = vector.broadcast %c16_i32 : i32 to vector<16x128xi32>
    %18 = arith.cmpi sge, %11, %17 : vector<16x128xi32>
    %c4_i32 = arith.constant 4 : i32
    %19 = vector.broadcast %c4_i32 : i32 to vector<16x128xi32>
    %20 = arith.select %18, %19, %16 : vector<16x128xi1>, vector<16x128xi32>
    %c16_i32_7 = arith.constant 16 : i32
    %21 = vector.broadcast %c16_i32_7 : i32 to vector<16x128xi32>
    %22 = arith.subi %21, %20 : vector<16x128xi32>
    %23 = arith.cmpi sle, %10, %22 : vector<16x128xi32>
    %24 = vector.shape_cast %23 : vector<16x128xi1> to vector<1x16x128xi1>
    %cst_8 = arith.constant 0.000000e+00 : f32
    %25 = vector.shape_cast %24 : vector<1x16x128xi1> to vector<1x16x128xi1>
    %26 = vector.broadcast %25 : vector<1x16x128xi1> to vector<2x16x128xi1>
    %27 = vector.broadcast %cst_8 : f32 to vector<2x16x128xf32>
    %28 = arith.select %26, %9, %27 : vector<2x16x128xi1>, vector<2x16x128xf32>
    %cst_9 = arith.constant dense<0xFF800000> : vector<2x128xf32>
    %29 = vector.multi_reduction <maximumf>, %28, %cst_9 [1] : vector<2x16x128xf32> to vector<2x128xf32>
    %30 = arith.truncf %29 : vector<2x128xf32> to vector<2x128xbf16>
    %c0_10 = arith.constant 0 : index
    %c0_11 = arith.constant 0 : index
    %31 = vector.load %arg6[%c0_10, %c0_11] : memref<128x32xbf16, #tpu.memory_space<vmem>>, vector<128x32xbf16>
    %cst_12 = arith.constant dense<0.000000e+00> : vector<2x32xf32>
    %32 = tpu.matmul %30, %31, %cst_12 {dimension_numbers = #tpu.dot_dimension_numbers<[1], [0], [0], [1], [0, 0, 1, 1], [], []>} : vector<2x128xbf16>, vector<128x32xbf16>, vector<2x32xf32> -> vector<2x32xf32>
    %c0_13 = arith.constant 0 : index
    %c0_14 = arith.constant 0 : index
    %33 = vector.load %arg7[%c0_13, %c0_14] : memref<1x32xf32, #tpu.memory_space<vmem>>, vector<1x32xf32>
    %34 = vector.broadcast %33 : vector<1x32xf32> to vector<2x32xf32>
    %35 = arith.addf %32, %34 : vector<2x32xf32>
    %36 = math.tanh %35 : vector<2x32xf32>
    %c0_15 = arith.constant 0 : index
    %c0_16 = arith.constant 0 : index
    %37 = vector.load %arg2[%c0_15, %c0_16] : memref<2x1xf32, #tpu.memory_space<vmem>>, vector<2x1xf32>
    %cst_17 = arith.constant -0.0333333351 : f32
    %38 = vector.broadcast %cst_17 : f32 to vector<2x1xf32>
    %39 = arith.mulf %37, %38 : vector<2x1xf32>
    %40 = math.exp %39 : vector<2x1xf32>
    %41 = vector.broadcast %40 : vector<2x1xf32> to vector<2x32xf32>
    %42 = arith.mulf %36, %41 : vector<2x32xf32>
    %43 = arith.truncf %42 : vector<2x32xf32> to vector<2x32xbf16>
    %c0_18 = arith.constant 0 : index
    %c0_19 = arith.constant 0 : index
    %44 = vector.load %arg8[%c0_18, %c0_19] : memref<32x32xbf16, #tpu.memory_space<vmem>>, vector<32x32xbf16>
    %cst_20 = arith.constant dense<0.000000e+00> : vector<2x32xf32>
    %45 = tpu.matmul %43, %44, %cst_20 {dimension_numbers = #tpu.dot_dimension_numbers<[1], [0], [0], [1], [0, 0, 1, 1], [], []>} : vector<2x32xbf16>, vector<32x32xbf16>, vector<2x32xf32> -> vector<2x32xf32>
    %c0_21 = arith.constant 0 : index
    %c0_22 = arith.constant 0 : index
    %46 = vector.load %arg9[%c0_21, %c0_22] : memref<1x32xf32, #tpu.memory_space<vmem>>, vector<1x32xf32>
    %47 = vector.broadcast %46 : vector<1x32xf32> to vector<2x32xf32>
    %48 = arith.addf %45, %47 : vector<2x32xf32>
    %49 = math.tanh %48 : vector<2x32xf32>
    %50 = arith.truncf %49 : vector<2x32xf32> to vector<2x32xbf16>
    %c0_23 = arith.constant 0 : index
    %c0_24 = arith.constant 0 : index
    %51 = vector.load %arg10[%c0_23, %c0_24] : memref<32x5xbf16, #tpu.memory_space<vmem>>, vector<32x5xbf16>
    %cst_25 = arith.constant dense<0.000000e+00> : vector<2x5xf32>
    %52 = tpu.matmul %50, %51, %cst_25 {dimension_numbers = #tpu.dot_dimension_numbers<[1], [0], [0], [1], [0, 0, 1, 1], [], []>} : vector<2x32xbf16>, vector<32x5xbf16>, vector<2x5xf32> -> vector<2x5xf32>
    %c0_26 = arith.constant 0 : index
    %c0_27 = arith.constant 0 : index
    %53 = vector.load %arg3[%c0_26, %c0_27] : memref<2x4xbf16, #tpu.memory_space<vmem>>, vector<2x4xbf16>
    %c0_28 = arith.constant 0 : index
    %c0_29 = arith.constant 0 : index
    %54 = vector.load %arg11[%c0_28, %c0_29] : memref<4x5xbf16, #tpu.memory_space<vmem>>, vector<4x5xbf16>
    %cst_30 = arith.constant dense<0.000000e+00> : vector<2x5xf32>
    %55 = tpu.matmul %53, %54, %cst_30 {dimension_numbers = #tpu.dot_dimension_numbers<[1], [0], [0], [1], [0, 0, 1, 1], [], []>} : vector<2x4xbf16>, vector<4x5xbf16>, vector<2x5xf32> -> vector<2x5xf32>
    %56 = arith.addf %52, %55 : vector<2x5xf32>
    %c0_31 = arith.constant 0 : index
    %c0_32 = arith.constant 0 : index
    %57 = vector.load %arg12[%c0_31, %c0_32] : memref<1x5xf32, #tpu.memory_space<vmem>>, vector<1x5xf32>
    %58 = vector.broadcast %57 : vector<1x5xf32> to vector<2x5xf32>
    %59 = arith.addf %56, %58 : vector<2x5xf32>
    %c0_33 = arith.constant 0 : index
    %c0_34 = arith.constant 0 : index
    %60 = vector.load %arg13[%c0_33, %c0_34] : memref<2x5xf32, #tpu.memory_space<vmem>>, vector<2x5xf32>
    tpu.vector_store %arg13[%c0_33, %c0_34], %59 {strides = array<i32>} : memref<2x5xf32, #tpu.memory_space<vmem>>, vector<2x5xf32>,
    return
  }
  func.func @transform_0(%arg0: i32) -> (i32, i32, i32) {
    %c0_i32 = arith.constant 0 : i32
    %c0_i32_0 = arith.constant 0 : i32
    %c0_i32_1 = arith.constant 0 : i32
    return %arg0, %c0_i32, %c0_i32_0 : i32, i32, i32
  }
  func.func @transform_1(%arg0: i32) -> (i32, i32) {
    %c0_i32 = arith.constant 0 : i32
    %c0_i32_0 = arith.constant 0 : i32
    return %arg0, %c0_i32 : i32, i32
  }
  func.func @transform_2(%arg0: i32) -> (i32, i32) {
    %c0_i32 = arith.constant 0 : i32
    %c0_i32_0 = arith.constant 0 : i32
    return %arg0, %c0_i32 : i32, i32
  }
  func.func @transform_3(%arg0: i32) -> (i32, i32) {
    %c0_i32 = arith.constant 0 : i32
    %c0_i32_0 = arith.constant 0 : i32
    %c0_i32_1 = arith.constant 0 : i32
    return %c0_i32, %c0_i32_0 : i32, i32
  }
  func.func @transform_4(%arg0: i32) -> (i32, i32) {
    %c0_i32 = arith.constant 0 : i32
    %c0_i32_0 = arith.constant 0 : i32
    %c0_i32_1 = arith.constant 0 : i32
    return %c0_i32, %c0_i32_0 : i32, i32
  }
  func.func @transform_5(%arg0: i32) -> (i32, i32) {
    %c0_i32 = arith.constant 0 : i32
    %c0_i32_0 = arith.constant 0 : i32
    %c0_i32_1 = arith.constant 0 : i32
    return %c0_i32, %c0_i32_0 : i32, i32
  }
  func.func @transform_6(%arg0: i32) -> (i32, i32) {
    %c0_i32 = arith.constant 0 : i32
    %c0_i32_0 = arith.constant 0 : i32
    %c0_i32_1 = arith.constant 0 : i32
    return %c0_i32, %c0_i32_0 : i32, i32
  }
  func.func @transform_7(%arg0: i32) -> (i32, i32) {
    %c0_i32 = arith.constant 0 : i32
    %c0_i32_0 = arith.constant 0 : i32
    %c0_i32_1 = arith.constant 0 : i32
    return %c0_i32, %c0_i32_0 : i32, i32
  }
  func.func @transform_8(%arg0: i32) -> (i32, i32) {
    %c0_i32 = arith.constant 0 : i32
    %c0_i32_0 = arith.constant 0 : i32
    %c0_i32_1 = arith.constant 0 : i32
    return %c0_i32, %c0_i32_0 : i32, i32
  }
  func.func @transform_9(%arg0: i32) -> (i32, i32) {
    %c0_i32 = arith.constant 0 : i32
    %c0_i32_0 = arith.constant 0 : i32
    %c0_i32_1 = arith.constant 0 : i32
    return %c0_i32, %c0_i32_0 : i32, i32
  }
  func.func @transform_10(%arg0: i32) -> (i32, i32) {
    %c0_i32 = arith.constant 0 : i32
    %c0_i32_0 = arith.constant 0 : i32
    %c0_i32_1 = arith.constant 0 : i32
    return %c0_i32, %c0_i32_0 : i32, i32
  }
  func.func @transform_11(%arg0: i32) -> (i32, i32) {
    %c0_i32 = arith.constant 0 : i32
    %c0_i32_0 = arith.constant 0 : i32
    %c0_i32_1 = arith.constant 0 : i32
    return %c0_i32, %c0_i32_0 : i32, i32
  }
  func.func @transform_12(%arg0: i32) -> (i32, i32) {
    %c0_i32 = arith.constant 0 : i32
    %c0_i32_0 = arith.constant 0 : i32
    return %arg0, %c0_i32 : i32, i32
  }
}

</mosaic_0001>

<llo_original>
// kernel: tpu_custom_call.1
$region0: #{tpu_custom_call.1}
  #allocation0 [shape = 'u32[]', space=smem, size = 0x4, offset = 0x4, fixed_abs, tag = 'smem constant byte address 0x4 - core index']
  #allocation1 [shape = 'u32[144,128]{1,0:T(1,128)}', space=vmem, size = 0x12000, scoped, tag = 'internal scratch']
  %s0 = inlined_call_operand.vmem [shape: bf16[2,16,128], index: 0, kind: input, shape index: {}]
  %s1 = inlined_call_operand.vmem [shape: f32[2,1], index: 1, kind: input, shape index: {}]
  %s2 = inlined_call_operand.vmem [shape: bf16[2,4], index: 2, kind: input, shape index: {}]
  %s3 = inlined_call_operand.vmem [shape: bf16[128,128], index: 3, kind: input, shape index: {}]
  %s4 = inlined_call_operand.vmem [shape: f32[1,128], index: 4, kind: input, shape index: {}]
  %s5 = inlined_call_operand.vmem [shape: bf16[128,32], index: 5, kind: input, shape index: {}]
  %s6 = inlined_call_operand.vmem [shape: f32[1,32], index: 6, kind: input, shape index: {}]
  %s7 = inlined_call_operand.vmem [shape: bf16[32,32], index: 7, kind: input, shape index: {}]
  %s8 = inlined_call_operand.vmem [shape: f32[1,32], index: 8, kind: input, shape index: {}]
  %s9 = inlined_call_operand.vmem [shape: bf16[32,5], index: 9, kind: input, shape index: {}]
  %s10 = inlined_call_operand.vmem [shape: bf16[4,5], index: 10, kind: input, shape index: {}]
  %s11 = inlined_call_operand.vmem [shape: f32[1,5], index: 11, kind: input, shape index: {}]
  %s12 = inlined_call_operand.hbm [shape: f32[2,5], index: 12, kind: output, shape index: {}]
  %s13 = sld [smem:[#allocation0]]
  $region58: #{tpu_custom_call.1} parent=0
    _
  %s15 = ssub.s32 1, %s13
  %s16 = scalar_select 0, %s15, %s13
  $region1: #{tpu_custom_call.1} parent=0
    #allocation2 [shape = 'u8[1024]{0}', space=vmem, size = 0x400, scoped, tag = 'output window, operand 0, single buffered']
    #allocation3 [shape = 's32[1]{0}', space=sflag, size = 0x4, scoped, tag = 'scoped memory for tpu_custom_call.1']
    %17 = vsyncpa [#allocation3], 0
    // Predicated region
    $region2: #{tpu_custom_call.1} parent=1 // pred_check
      _
    $region3: #{tpu_custom_call.1} parent=1 // pred_check_branch
      %19 = sbr.rel (0) target = $region5
    $region4: #{tpu_custom_call.1} parent=1 // pred_region
      _
    $region5: #{tpu_custom_call.1} parent=1 // pred_fallthru
      _
    // Predicated region
    $region6: #{tpu_custom_call.1} parent=1 // pred_check
      _
    $region7: #{tpu_custom_call.1} parent=1 // pred_check_branch
      %21 = sbr.rel (0) target = $region9
    $region8: #{tpu_custom_call.1} parent=1 // pred_region
      _
    $region9: #{tpu_custom_call.1} parent=1 // pred_fallthru
      _
    // Predicated region
    $region10: #{tpu_custom_call.1} parent=1 // pred_check
      _
    $region11: #{tpu_custom_call.1} parent=1 // pred_check_branch
      %23 = sbr.rel (0) target = $region13
    $region12: #{tpu_custom_call.1} parent=1 // pred_region
      _
    $region13: #{tpu_custom_call.1} parent=1 // pred_fallthru
      _
    // Predicated region
    $region14: #{tpu_custom_call.1} parent=1 // pred_check
      _
    $region15: #{tpu_custom_call.1} parent=1 // pred_check_branch
      %25 = sbr.rel (0) target = $region17
    $region16: #{tpu_custom_call.1} parent=1 // pred_region
      _
    $region17: #{tpu_custom_call.1} parent=1 // pred_fallthru
      _
    // Predicated region
    $region18: #{tpu_custom_call.1} parent=1 // pred_check
      _
    $region19: #{tpu_custom_call.1} parent=1 // pred_check_branch
      %27 = sbr.rel (0) target = $region21
    $region20: #{tpu_custom_call.1} parent=1 // pred_region
      _
    $region21: #{tpu_custom_call.1} parent=1 // pred_fallthru
      _
    // Predicated region
    $region22: #{tpu_custom_call.1} parent=1 // pred_check
      _
    $region23: #{tpu_custom_call.1} parent=1 // pred_check_branch
      %29 = sbr.rel (0) target = $region25
    $region24: #{tpu_custom_call.1} parent=1 // pred_region
      _
    $region25: #{tpu_custom_call.1} parent=1 // pred_fallthru
      _
    // Predicated region
    $region26: #{tpu_custom_call.1} parent=1 // pred_check
      _
    $region27: #{tpu_custom_call.1} parent=1 // pred_check_branch
      %31 = sbr.rel (0) target = $region29
    $region28: #{tpu_custom_call.1} parent=1 // pred_region
      _
    $region29: #{tpu_custom_call.1} parent=1 // pred_fallthru
      _
    // Predicated region
    $region30: #{tpu_custom_call.1} parent=1 // pred_check
      _
    $region31: #{tpu_custom_call.1} parent=1 // pred_check_branch
      %33 = sbr.rel (0) target = $region33
    $region32: #{tpu_custom_call.1} parent=1 // pred_region
      _
    $region33: #{tpu_custom_call.1} parent=1 // pred_fallthru
      _
    // Predicated region
    $region34: #{tpu_custom_call.1} parent=1 // pred_check
      _
    $region35: #{tpu_custom_call.1} parent=1 // pred_check_branch
      %35 = sbr.rel (0) target = $region37
    $region36: #{tpu_custom_call.1} parent=1 // pred_region
      _
    $region37: #{tpu_custom_call.1} parent=1 // pred_fallthru
      _
    // Predicated region
    $region38: #{tpu_custom_call.1} parent=1 // pred_check
      _
    $region39: #{tpu_custom_call.1} parent=1 // pred_check_branch
      %37 = sbr.rel (0) target = $region41
    $region40: #{tpu_custom_call.1} parent=1 // pred_region
      _
    $region41: #{tpu_custom_call.1} parent=1 // pred_fallthru
      _
    // Predicated region
    $region42: #{tpu_custom_call.1} parent=1 // pred_check
      _
    $region43: #{tpu_custom_call.1} parent=1 // pred_check_branch
      %39 = sbr.rel (0) target = $region45
    $region44: #{tpu_custom_call.1} parent=1 // pred_region
      _
    $region45: #{tpu_custom_call.1} parent=1 // pred_fallthru
      _
    // Predicated region
    $region46: #{tpu_custom_call.1} parent=1 // pred_check
      _
    $region47: #{tpu_custom_call.1} parent=1 // pred_check_branch
      %41 = sbr.rel (0) target = $region49
    $region48: #{tpu_custom_call.1} parent=1 // pred_region
      _
    $region49: #{tpu_custom_call.1} parent=1 // pred_fallthru
      _
    %v43 = vld [vmem:[%s0] sm:$0xf]
    %v44 = vld [vmem:[%s0 + $0x4] sm:$0xf]
    %v45 = vld [vmem:[%s0 + $0x8] sm:$0xf]
    %v46 = vld [vmem:[%s0 + $0xc] sm:$0xf]
    %v47 = vld [vmem:[%s3] sm:$0xf]
    %v48 = vld [vmem:[%s3 + $0x4] sm:$0xf]
    %v49 = vld [vmem:[%s3 + $0x8] sm:$0xf]
    %v50 = vld [vmem:[%s3 + $0xc] sm:$0xf]
    %v51 = vld [vmem:[%s3 + $0x10] sm:$0xf]
    %v52 = vld [vmem:[%s3 + $0x14] sm:$0xf]
    %v53 = vld [vmem:[%s3 + $0x18] sm:$0xf]
    %v54 = vld [vmem:[%s3 + $0x1c] sm:$0xf]
    %v55 = vld [vmem:[%s3 + $0x20] sm:$0xf]
    %v56 = vld [vmem:[%s3 + $0x24] sm:$0xf]
    %v57 = vld [vmem:[%s3 + $0x28] sm:$0xf]
    %v58 = vld [vmem:[%s3 + $0x2c] sm:$0xf]
    %v59 = vld [vmem:[%s3 + $0x30] sm:$0xf]
    %v60 = vld [vmem:[%s3 + $0x34] sm:$0xf]
    %v61 = vld [vmem:[%s3 + $0x38] sm:$0xf]
    %v62 = vld [vmem:[%s3 + $0x3c] sm:$0xf]
    %v63 = vld [vmem:[%s4] sm:$0x1]
    %v65 = vlaneseq
    %v66 = vshrl.u32 %v65, 7
    %v67 = vsub.s32 0, %v66
    %v68 = vrot.slane %v63, %v67
    %v74 = vunpack.c.l.b16 %v43
    %v75 = vunpack.c.l.b16 %v44
    %v76 = vunpack.c.l.b16 %v45
    %v77 = vunpack.c.l.b16 %v46
    %v78 = vpack.c.b16 %v75, %v74
    %v79 = vpack.c.b16 %v77, %v76
    %v98 = vunpack.c.l.b16 %v47
    %v99 = vunpack.c.l.b16 %v48
    %v100 = vunpack.c.l.b16 %v49
    %v101 = vunpack.c.l.b16 %v50
    %v102 = vunpack.c.l.b16 %v51
    %v103 = vunpack.c.l.b16 %v52
    %v104 = vunpack.c.l.b16 %v53
    %v105 = vunpack.c.l.b16 %v54
    %v106 = vunpack.c.l.b16 %v55
    %v107 = vunpack.c.l.b16 %v56
    %v108 = vunpack.c.l.b16 %v57
    %v109 = vunpack.c.l.b16 %v58
    %v110 = vunpack.c.l.b16 %v59
    %v111 = vunpack.c.l.b16 %v60
    %v112 = vunpack.c.l.b16 %v61
    %v113 = vunpack.c.l.b16 %v62
    %v114 = vpack.c.b16 %v99, %v98
    %v115 = vpack.c.b16 %v101, %v100
    %v116 = vpack.c.b16 %v103, %v102
    %v117 = vpack.c.b16 %v105, %v104
    %v118 = vpack.c.b16 %v107, %v106
    %v119 = vpack.c.b16 %v109, %v108
    %v120 = vpack.c.b16 %v111, %v110
    %v121 = vpack.c.b16 %v113, %v112
    %130 = vmatprep.subr.bf16.mxu0 0
    %131 = vmatpush1.bf16.msra.mxu0 %v114
    %132 = vmatprep.subr.bf16.mxu0 0
    %133 = vmatpush1.bf16.msra.mxu0 %v115
    %134 = vmatprep.subr.bf16.mxu0 0
    %135 = vmatpush1.bf16.msra.mxu0 %v116
    %136 = vmatprep.subr.bf16.mxu0 0
    %137 = vmatpush1.bf16.msra.mxu0 %v117
    %138 = vmatprep.subr.bf16.mxu0 0
    %139 = vmatpush1.bf16.msra.mxu0 %v118
    %140 = vmatprep.subr.bf16.mxu0 0
    %141 = vmatpush1.bf16.msra.mxu0 %v119
    %142 = vmatprep.subr.bf16.mxu0 0
    %143 = vmatpush1.bf16.msra.mxu0 %v120
    %144 = vmatprep.subr.bf16.mxu0 0
    %145 = vmatpush1.bf16.msra.mxu0 %v121
    %146 = vmatprep.subr.bf16.mxu0 0
    %147 = vmatpush1.bf16.msra.mxu0 0
    %148 = vmatprep.subr.bf16.mxu0 0
    %149 = vmatpush1.bf16.msra.mxu0 0
    %150 = vmatprep.subr.bf16.mxu0 0
    %151 = vmatpush1.bf16.msra.mxu0 0
    %152 = vmatprep.subr.bf16.mxu0 0
    %153 = vmatpush1.bf16.msra.mxu0 0
    %154 = vmatprep.subr.bf16.mxu0 0
    %155 = vmatpush1.bf16.msra.mxu0 0
    %156 = vmatprep.subr.bf16.mxu0 0
    %157 = vmatpush1.bf16.msra.mxu0 0
    %158 = vmatprep.subr.bf16.mxu0 0
    %159 = vmatpush1.bf16.msra.mxu0 0
    %160 = vmatprep.subr.bf16.mxu0 0
    %161 = vmatpush1.bf16.msra.mxu0 0
    %162 = vmatprep.mubr.bf16.mxu0 0
    %163 = vmatmul.mubr.bf16.gmra.mrb[0].mxu0 %v78
    %v164 = vpop.f32.mrb[0].mxu0
    %v165 = vadd.f32 %v68, %v164
    %v166 = vpop.f32.mrb[0].mxu0
    %v167 = vpop.f32.mrb[0].mxu0
    %v168 = vadd.f32 %v68, %v167
    %v169 = vpop.f32.mrb[0].mxu0
    %170 = vmatprep.mubr.bf16.mxu0 0
    %171 = vmatmul.mubr.bf16.gmra.mrb[0].mxu0 %v79
    %v172 = vpop.f32.mrb[0].mxu0
    %v173 = vadd.f32 %v68, %v172
    %v174 = vpop.f32.mrb[0].mxu0
    %v175 = vpop.f32.mrb[0].mxu0
    %v176 = vadd.f32 %v68, %v175
    %v177 = vpop.f32.mrb[0].mxu0
    %178 = vdwg.mxu0
    %v179 = vmax.f32 %v165, 0.0
    %v180 = vmax.f32 %v168, 0.0
    %v181 = vmax.f32 %v173, 0.0
    %v182 = vmax.f32 %v176, 0.0
    %v183 = vlaneseq
    %v184 = vshrl.u32 %v183, 7
    %v185 = vadd.s32 %v184, 8
    %v186 = vlaneseq
    %v187 = vand.u32 %v186, 127
    %vm188 = vcmp.ge.s32.totalorder %v187, 8
    %v189 = vsel %vm188, 3, 2
    %vm190 = vcmp.ge.s32.totalorder %v187, 16
    %v191 = vsel %vm190, 4, %v189
    %v192 = vsub.s32 16, %v191
    %vm193 = vcmp.le.s32.totalorder %v184, %v192
    %vm194 = vcmp.le.s32.totalorder %v185, %v192
    %v195 = vsel %vm193, 1, 0
    %v196 = vsel %vm194, 1, 0
    %vm197 = vcmp.eq.s32.totalorder %v195, 1
    %vm198 = vcmp.eq.s32.totalorder %v196, 1
    %v199 = vsel %vm197, %v179, 0.0
    %v200 = vsel %vm198, %v180, 0.0
    %v201 = vsel %vm197, %v181, 0.0
    %v202 = vsel %vm198, %v182, 0.0
    %v203 = vmax.f32 %v199, %v200
    %v204 = vrot.slane %v203, 4
    %v205 = vmax.f32 %v203, %v204
    %v206 = vrot.slane %v205, 2
    %v207 = vmax.f32 %v205, %v206
    %v208 = vrot.slane %v207, 1
    %v209 = vmax.f32 %v207, %v208
    %v210 = vmax.f32 %v201, %v202
    %v211 = vrot.slane %v210, 4
    %v212 = vmax.f32 %v210, %v211
    %v213 = vrot.slane %v212, 2
    %v214 = vmax.f32 %v212, %v213
    %v215 = vrot.slane %v214, 1
    %v216 = vmax.f32 %v214, %v215
    %v217 = vpack.c.bf16 %v209, %v209
    %v218 = vpack.c.bf16 %v216, %v216
    %v219 = vld [vmem:[%s5] sm:$0xf]
    %v220 = vld [vmem:[%s5 + $0x4] sm:$0xf]
    %v221 = vld [vmem:[%s5 + $0x8] sm:$0xf]
    %v222 = vld [vmem:[%s5 + $0xc] sm:$0xf]
    %v223 = vld [vmem:[%s5 + $0x10] sm:$0xf]
    %v224 = vld [vmem:[%s5 + $0x14] sm:$0xf]
    %v225 = vld [vmem:[%s5 + $0x18] sm:$0xf]
    %v226 = vld [vmem:[%s5 + $0x1c] sm:$0xf]
    %v227 = vld [vmem:[%s5 + $0x20] sm:$0xf]
    %v228 = vld [vmem:[%s5 + $0x24] sm:$0xf]
    %v229 = vld [vmem:[%s5 + $0x28] sm:$0xf]
    %v230 = vld [vmem:[%s5 + $0x2c] sm:$0xf]
    %v231 = vld [vmem:[%s5 + $0x30] sm:$0xf]
    %v232 = vld [vmem:[%s5 + $0x34] sm:$0xf]
    %v233 = vld [vmem:[%s5 + $0x38] sm:$0xf]
    %v234 = vld [vmem:[%s5 + $0x3c] sm:$0xf]
    %v235 = vld [vmem:[%s6] sm:$0x1]
    %v237 = vlaneseq
    %v238 = vshrl.u32 %v237, 7
    %v239 = vsub.s32 0, %v238
    %v240 = vrot.slane %v235, %v239
    %v244 = vunpack.c.l.b16 %v217
    %v245 = vunpack.c.l.b16 %v218
    %vm246 = vcmask 1041409
    %v247 = vsel %vm246, %v245, %v244
    %v248 = vpack.c.b16 %v247, %v247
    %v266 = vunpack.c.l.b16 %v219
    %v267 = vunpack.c.l.b16 %v220
    %v268 = vunpack.c.l.b16 %v221
    %v269 = vunpack.c.l.b16 %v222
    %v270 = vunpack.c.l.b16 %v223
    %v271 = vunpack.c.l.b16 %v224
    %v272 = vunpack.c.l.b16 %v225
    %v273 = vunpack.c.l.b16 %v226
    %v274 = vunpack.c.l.b16 %v227
    %v275 = vunpack.c.l.b16 %v228
    %v276 = vunpack.c.l.b16 %v229
    %v277 = vunpack.c.l.b16 %v230
    %v278 = vunpack.c.l.b16 %v231
    %v279 = vunpack.c.l.b16 %v232
    %v280 = vunpack.c.l.b16 %v233
    %v281 = vunpack.c.l.b16 %v234
    %v282 = vpack.c.b16 %v267, %v266
    %v283 = vpack.c.b16 %v269, %v268
    %v284 = vpack.c.b16 %v271, %v270
    %v285 = vpack.c.b16 %v273, %v272
    %v286 = vpack.c.b16 %v275, %v274
    %v287 = vpack.c.b16 %v277, %v276
    %v288 = vpack.c.b16 %v279, %v278
    %v289 = vpack.c.b16 %v281, %v280
    %298 = vmatprep.subr.bf16.mxu0 0
    %299 = vmatpush1.bf16.msra.mxu0 %v282
    %300 = vmatprep.subr.bf16.mxu0 0
    %301 = vmatpush1.bf16.msra.mxu0 %v283
    %302 = vmatprep.subr.bf16.mxu0 0
    %303 = vmatpush1.bf16.msra.mxu0 %v284
    %304 = vmatprep.subr.bf16.mxu0 0
    %305 = vmatpush1.bf16.msra.mxu0 %v285
    %306 = vmatprep.subr.bf16.mxu0 0
    %307 = vmatpush1.bf16.msra.mxu0 %v286
    %308 = vmatprep.subr.bf16.mxu0 0
    %309 = vmatpush1.bf16.msra.mxu0 %v287
    %310 = vmatprep.subr.bf16.mxu0 0
    %311 = vmatpush1.bf16.msra.mxu0 %v288
    %312 = vmatprep.subr.bf16.mxu0 0
    %313 = vmatpush1.bf16.msra.mxu0 %v289
    %314 = vmatprep.subr.bf16.mxu0 0
    %315 = vmatpush1.bf16.msra.mxu0 0
    %316 = vmatprep.subr.bf16.mxu0 0
    %317 = vmatpush1.bf16.msra.mxu0 0
    %318 = vmatprep.subr.bf16.mxu0 0
    %319 = vmatpush1.bf16.msra.mxu0 0
    %320 = vmatprep.subr.bf16.mxu0 0
    %321 = vmatpush1.bf16.msra.mxu0 0
    %322 = vmatprep.subr.bf16.mxu0 0
    %323 = vmatpush1.bf16.msra.mxu0 0
    %324 = vmatprep.subr.bf16.mxu0 0
    %325 = vmatpush1.bf16.msra.mxu0 0
    %326 = vmatprep.subr.bf16.mxu0 0
    %327 = vmatpush1.bf16.msra.mxu0 0
    %328 = vmatprep.subr.bf16.mxu0 0
    %329 = vmatpush1.bf16.msra.mxu0 0
    %330 = vmatprep.mubr.bf16.mxu0 0
    %331 = vmatmul.mubr.bf16.gmra.mrb[0].mxu0 %v248
    %v332 = vpop.f32.mrb[0].mxu0
    %v333 = vadd.f32 %v240, %v332
    %v334 = vpop.f32.mrb[0].mxu0
    %v335 = vpop.f32.mrb[0].mxu0
    %v336 = vpop.f32.mrb[0].mxu0
    %337 = vdwg.mxu0
    %v338 = vtanh.pop %v333
    %v339 = vld [vmem:[%s1] sm:$0x3]
    %v340 = vmul.f32 %v339, -0.033333335
    %v341 = vmul.f32 %v340, 1.442695
    %v342 = vpow.pop %v341
    %344 = vset.pattern.permute.xlu0 0
    %345 = vperm.xlu0 %344, %v342
    %v346 = vpop.permute.xlu0 %345
    %v348 = vmul.f32 %v338, %v346
    %v349 = vpack.c.bf16 %v348, %v348
    %v350 = vld [vmem:[%s7] sm:$0xf]
    %v351 = vld [vmem:[%s7 + $0x4] sm:$0xf]
    %v352 = vld [vmem:[%s7 + $0x8] sm:$0xf]
    %v353 = vld [vmem:[%s7 + $0xc] sm:$0xf]
    %v354 = vld [vmem:[%s8] sm:$0x1]
    %v356 = vlaneseq
    %v357 = vshrl.u32 %v356, 7
    %v358 = vsub.s32 0, %v357
    %v359 = vrot.slane %v354, %v358
    %v365 = vunpack.c.l.b16 %v350
    %v366 = vunpack.c.l.b16 %v351
    %v367 = vunpack.c.l.b16 %v352
    %v368 = vunpack.c.l.b16 %v353
    %v369 = vpack.c.b16 %v366, %v365
    %v370 = vpack.c.b16 %v368, %v367
    %vm373 = vcmask 261120
    %v375 = vsel %vm373, %v349, 0
    %377 = vmatprep.subr.bf16.mxu0 0
    %378 = vmatpush1.bf16.msra.mxu0 %v369
    %379 = vmatprep.subr.bf16.mxu0 0
    %380 = vmatpush1.bf16.msra.mxu0 %v370
    %381 = vmatprep.subr.bf16.mxu0 0
    %382 = vmatpush1.bf16.msra.mxu0 0
    %383 = vmatprep.subr.bf16.mxu0 0
    %384 = vmatpush1.bf16.msra.mxu0 0
    %385 = vmatprep.subr.bf16.mxu0 0
    %386 = vmatpush1.bf16.msra.mxu0 0
    %387 = vmatprep.subr.bf16.mxu0 0
    %388 = vmatpush1.bf16.msra.mxu0 0
    %389 = vmatprep.subr.bf16.mxu0 0
    %390 = vmatpush1.bf16.msra.mxu0 0
    %391 = vmatprep.subr.bf16.mxu0 0
    %392 = vmatpush1.bf16.msra.mxu0 0
    %393 = vmatprep.subr.bf16.mxu0 0
    %394 = vmatpush1.bf16.msra.mxu0 0
    %395 = vmatprep.subr.bf16.mxu0 0
    %396 = vmatpush1.bf16.msra.mxu0 0
    %397 = vmatprep.subr.bf16.mxu0 0
    %398 = vmatpush1.bf16.msra.mxu0 0
    %399 = vmatprep.subr.bf16.mxu0 0
    %400 = vmatpush1.bf16.msra.mxu0 0
    %401 = vmatprep.subr.bf16.mxu0 0
    %402 = vmatpush1.bf16.msra.mxu0 0
    %403 = vmatprep.subr.bf16.mxu0 0
    %404 = vmatpush1.bf16.msra.mxu0 0
    %405 = vmatprep.subr.bf16.mxu0 0
    %406 = vmatpush1.bf16.msra.mxu0 0
    %407 = vmatprep.subr.bf16.mxu0 0
    %408 = vmatpush1.bf16.msra.mxu0 0
    %409 = vmatprep.mubr.bf16.mxu0 0
    %410 = vmatmul.mubr.bf16.gmra.mrb[0].mxu0 %v375
    %v411 = vpop.f32.mrb[0].mxu0
    %v412 = vadd.f32 %v359, %v411
    %v413 = vpop.f32.mrb[0].mxu0
    %v414 = vpop.f32.mrb[0].mxu0
    %v415 = vpop.f32.mrb[0].mxu0
    %416 = vdwg.mxu0
    %v417 = vtanh.pop %v412
    %v418 = vpack.c.bf16 %v417, %v417
    %v419 = vld [vmem:[%s9] sm:$0xf]
    %v420 = vld [vmem:[%s9 + $0x4] sm:$0xf]
    %v421 = vld [vmem:[%s9 + $0x8] sm:$0xf]
    %v422 = vld [vmem:[%s9 + $0xc] sm:$0xf]
    %v423 = vld [vmem:[%s2] sm:$0x1]
    %v424 = vld [vmem:[%s10] sm:$0x3]
    %vm425 = vcmask 31744
    %v427 = vsel %vm425, %v423, 0
    %vm429 = vcmask 1041408
    %v431 = vsel %vm429, %v424, 0
    %433 = vmatprep.subr.bf16.mxu0 0
    %434 = vmatpush1.bf16.msra.mxu0 %v431
    %435 = vmatprep.subr.bf16.mxu0 0
    %436 = vmatpush1.bf16.msra.mxu0 0
    %437 = vmatprep.subr.bf16.mxu0 0
    %438 = vmatpush1.bf16.msra.mxu0 0
    %439 = vmatprep.subr.bf16.mxu0 0
    %440 = vmatpush1.bf16.msra.mxu0 0
    %441 = vmatprep.subr.bf16.mxu0 0
    %442 = vmatpush1.bf16.msra.mxu0 0
    %443 = vmatprep.subr.bf16.mxu0 0
    %444 = vmatpush1.bf16.msra.mxu0 0
    %445 = vmatprep.subr.bf16.mxu0 0
    %446 = vmatpush1.bf16.msra.mxu0 0
    %447 = vmatprep.subr.bf16.mxu0 0
    %448 = vmatpush1.bf16.msra.mxu0 0
    %449 = vmatprep.subr.bf16.mxu0 0
    %450 = vmatpush1.bf16.msra.mxu0 0
    %451 = vmatprep.subr.bf16.mxu0 0
    %452 = vmatpush1.bf16.msra.mxu0 0
    %453 = vmatprep.subr.bf16.mxu0 0
    %454 = vmatpush1.bf16.msra.mxu0 0
    %455 = vmatprep.subr.bf16.mxu0 0
    %456 = vmatpush1.bf16.msra.mxu0 0
    %457 = vmatprep.subr.bf16.mxu0 0
    %458 = vmatpush1.bf16.msra.mxu0 0
    %459 = vmatprep.subr.bf16.mxu0 0
    %460 = vmatpush1.bf16.msra.mxu0 0
    %461 = vmatprep.subr.bf16.mxu0 0
    %462 = vmatpush1.bf16.msra.mxu0 0
    %463 = vmatprep.subr.bf16.mxu0 0
    %464 = vmatpush1.bf16.msra.mxu0 0
    %465 = vmatprep.mubr.bf16.mxu0 0
    %466 = vmatmul.mubr.bf16.gmra.mrb[0].mxu0 %v427
    %v467 = vpop.f32.mrb[0].mxu0
    %v468 = vadd.f32 0.0, %v467
    %v469 = vpop.f32.mrb[0].mxu0
    %v470 = vpop.f32.mrb[0].mxu0
    %v471 = vpop.f32.mrb[0].mxu0
    %472 = vdwg.mxu0
    %v477 = vunpack.c.l.b16 %v419
    %v478 = vunpack.c.l.b16 %v420
    %v479 = vunpack.c.l.b16 %v421
    %v480 = vunpack.c.l.b16 %v422
    %v481 = vpack.c.b16 %v478, %v477
    %v482 = vpack.c.b16 %v480, %v479
    %v486 = vsel %vm373, %v418, 0
    %488 = vmatprep.subr.bf16.mxu0 0
    %489 = vmatpush1.bf16.msra.mxu0 %v481
    %490 = vmatprep.subr.bf16.mxu0 0
    %491 = vmatpush1.bf16.msra.mxu0 %v482
    %492 = vmatprep.subr.bf16.mxu0 0
    %493 = vmatpush1.bf16.msra.mxu0 0
    %494 = vmatprep.subr.bf16.mxu0 0
    %495 = vmatpush1.bf16.msra.mxu0 0
    %496 = vmatprep.subr.bf16.mxu0 0
    %497 = vmatpush1.bf16.msra.mxu0 0
    %498 = vmatprep.subr.bf16.mxu0 0
    %499 = vmatpush1.bf16.msra.mxu0 0
    %500 = vmatprep.subr.bf16.mxu0 0
    %501 = vmatpush1.bf16.msra.mxu0 0
    %502 = vmatprep.subr.bf16.mxu0 0
    %503 = vmatpush1.bf16.msra.mxu0 0
    %504 = vmatprep.subr.bf16.mxu0 0
    %505 = vmatpush1.bf16.msra.mxu0 0
    %506 = vmatprep.subr.bf16.mxu0 0
    %507 = vmatpush1.bf16.msra.mxu0 0
    %508 = vmatprep.subr.bf16.mxu0 0
    %509 = vmatpush1.bf16.msra.mxu0 0
    %510 = vmatprep.subr.bf16.mxu0 0
    %511 = vmatpush1.bf16.msra.mxu0 0
    %512 = vmatprep.subr.bf16.mxu0 0
    %513 = vmatpush1.bf16.msra.mxu0 0
    %514 = vmatprep.subr.bf16.mxu0 0
    %515 = vmatpush1.bf16.msra.mxu0 0
    %516 = vmatprep.subr.bf16.mxu0 0
    %517 = vmatpush1.bf16.msra.mxu0 0
    %518 = vmatprep.subr.bf16.mxu0 0
    %519 = vmatpush1.bf16.msra.mxu0 0
    %520 = vmatprep.mubr.bf16.mxu0 0
    %521 = vmatmul.mubr.bf16.gmra.mrb[0].mxu0 %v486
    %v522 = vpop.f32.mrb[0].mxu0
    %v523 = vadd.f32 %v468, %v522
    %v524 = vpop.f32.mrb[0].mxu0
    %v525 = vpop.f32.mrb[0].mxu0
    %v526 = vpop.f32.mrb[0].mxu0
    %527 = vdwg.mxu0
    %v528 = vld [vmem:[%s11] sm:$0x1]
    %v530 = vlaneseq
    %v531 = vshrl.u32 %v530, 7
    %v532 = vsub.s32 0, %v531
    %v533 = vrot.slane %v528, %v532
    %v535 = vadd.f32 %v523, %v533
    %vm536 = vcmask 33792
    %537 = vst.msk [vmem:[#allocation2] sm:$0x3] %vm536, %v535
    // Predicated region
    $region50: #{tpu_custom_call.1} parent=1 // pred_check
      _
    $region51: #{tpu_custom_call.1} parent=1 // pred_check_branch
      %539 = sbr.rel (0) target = $region53
    $region52: #{tpu_custom_call.1} parent=1 // pred_region
      %s541 = ssub.s32 32, 32
      %542 = vsyncadd [#allocation3], %s541
      %s544 = sshll.u32 [#allocation2], 4
      %s545 = int_to_ptr.vmem [resolvable:$true] %s544
      %547 = dma.vmem_to_hbm [thread:$0]  %s545, 32, %s12, [#allocation3]
    $region53: #{tpu_custom_call.1} parent=1 // pred_fallthru
      _
    // Predicated region
    $region54: #{tpu_custom_call.1} parent=1 // pred_check
      _
    $region55: #{tpu_custom_call.1} parent=1 // pred_check_branch
      %549 = sbr.rel (0) target = $region57
    $region56: #{tpu_custom_call.1} parent=1 // pred_region
      %550 = dma.done [#allocation3], 32
    $region57: #{tpu_custom_call.1} parent=1 // pred_fallthru
      _
    %551 = vsyncpa [#allocation3], 1

</llo_original>
